<compile_context>
chip_gen: v6e
topology: v6e:2x2x1
jax: 0.10.0
libtpu: 0.0.40
codegen_flags: <defaults>
</compile_context>

<pallas_src>
import functools

import jax
import jax.numpy as jnp
from jax.experimental import pallas as pl
from jax.experimental.pallas import tpu as pltpu

NEG_SLOPE = 0.01          # F.leaky_relu default negative slope
_MASK_VALUE = -1e30       # finite "-inf" for padded src columns / fc lanes


def _round_up(x, m):
    return ((x + m - 1) // m) * m


# ----------------------------------------------------------------------------
# One GAT direction: every src node -> every dst node.
#   e[d, s]   = leaky_relu( dst[d]·w_dst + src[s]·w_src + b )
#   alpha     = softmax_s(e)
#   h[d]      = sum_s alpha[d, s] * src[s]
#   out[d]    = softmax_feat( fc(h[d]) )
# Flash-style online softmax over src blocks; the (Ndst, Nsrc) score matrix is
# never materialized.
# ----------------------------------------------------------------------------
def _gat_dir_kernel(sdst_ref, src_ref, ssrc_ref, fcw_ref, fcb_ref, out_ref,
                    m_sc, l_sc, acc_sc, *, use_ones_col, denom_col):
    j = pl.program_id(1)

    @pl.when(j == 0)
    def _init():
        m_sc[...] = jnp.full_like(m_sc, -jnp.inf)
        l_sc[...] = jnp.zeros_like(l_sc)
        acc_sc[...] = jnp.zeros_like(acc_sc)

    # Scores directly in (dst, src) orientation -> softmax over the lane axis.
    # Padded src columns carry a -1e30 projection, so no explicit mask needed.
    e = sdst_ref[...] + ssrc_ref[...]                   # (Bd,1)+(1,Bs)->(Bd,Bs)
    e = jnp.where(e > 0, e, NEG_SLOPE * e)              # leaky_relu

    m_prev = m_sc[...]
    m_new = jnp.maximum(m_prev, jnp.max(e, axis=-1, keepdims=True))
    corr = jnp.exp(m_prev - m_new)
    p = jnp.exp(e - m_new)                              # (Bd, Bs) f32
    if not use_ones_col:                                # static fallback F==Fp
        l_sc[...] = corr * l_sc[...] + jnp.sum(p, axis=-1, keepdims=True)
    # Aggregation on the MXU; when use_ones_col, column `denom_col` of src is
    # all ones so this matmul also accumulates the softmax denominator.
    acc_sc[...] = corr * acc_sc[...] + jnp.dot(
        p.astype(jnp.bfloat16), src_ref[...],
        preferred_element_type=jnp.float32)
    m_sc[...] = m_new

    @pl.when(j == pl.num_programs(1) - 1)
    def _finalize():
        acc = acc_sc[...]
        if use_ones_col:
            l = acc[:, denom_col:denom_col + 1]
        else:
            l = l_sc[...]
        h = acc / l                                     # exact, once per block
        # fc + feature softmax; padded fc lanes carry -1e30 bias -> exp = 0.
        logits = jnp.dot(h.astype(jnp.bfloat16), fcw_ref[...],
                         preferred_element_type=jnp.float32) + fcb_ref[...]
        mx = jnp.max(logits, axis=-1, keepdims=True)
        pe = jnp.exp(logits - mx)
        out_ref[...] = pe / jnp.sum(pe, axis=-1, keepdims=True)


def _gat_direction(dst_feat, src_feat, w_dst, w_src, bias, fc_w, fc_b,
                   *, block_dst=512, block_src=512):
    """Runs one bipartite attention direction as a tiled pallas_call."""
    Nd, F = dst_feat.shape
    Ns, _ = src_feat.shape
    out_dim = fc_w.shape[1]

    Fp = _round_up(F, 128)            # lane-dense feature dim
    OUTP = _round_up(out_dim, 128)    # lane-dense output dim (no masked stores)

    # dst blocks: large to cut src re-reads, but keep >= 2 blocks on the
    # "parallel" axis when possible so both v7x TensorCores are used.
    Bd = min(block_dst, _round_up(Nd, 8))
    if _round_up(Nd, Bd) // Bd < 2 and Nd > 8:
        Bd = _round_up((Nd + 1) // 2, 8)
    Nd_p = _round_up(Nd, Bd)
    n_dst_blocks = Nd_p // Bd

    # src blocks: one full block, otherwise a multiple of 128 so the lane-dense
    # (1, Ns_p) projection row tiles cleanly.
    Ns_single = _round_up(Ns, 8)
    if block_src >= Ns_single:
        Bs = Ns_single
    else:
        Bs = _round_up(block_src, 128)
    Ns_p = _round_up(Ns, Bs)
    n_src_blocks = Ns_p // Bs

    use_ones_col = F < Fp             # fold sum(p) into the aggregation matmul
    denom_col = F

    # --- wrapper-side prep: rank-1 projections, padding only when needed ----
    # Per-dst projection + attention bias, column layout (Nd_p, 1).
    s_dst = (dst_feat @ w_dst + bias[0, 0]).astype(jnp.float32)       # (Nd, 1)
    if Nd_p != Nd:
        s_dst = jnp.zeros((Nd_p, 1), jnp.float32).at[:Nd].set(s_dst)

    # Per-src projection, lane-dense (1, Ns_p); padded columns get -1e30 so
    # their softmax weight underflows to zero inside the kernel.
    s_src = (src_feat @ w_src).reshape(1, Ns).astype(jnp.float32)
    if Ns_p != Ns:
        s_src = jnp.full((1, Ns_p), _MASK_VALUE,
                         jnp.float32).at[:, :Ns].set(s_src)

    # src features streamed in bf16 (halves HBM re-read + VMEM double buffer).
    if Fp != F or Ns_p != Ns:
        src_p = jnp.zeros((Ns_p, Fp), jnp.bfloat16).at[:Ns, :F].set(
            src_feat.astype(jnp.bfloat16))
        if use_ones_col:
            # Ones column accumulates sum(p) through the MXU; it multiplies
            # all-zero fc_w rows, so the logits are unaffected.
            src_p = src_p.at[:, denom_col].set(1.0)
    else:
        src_p = src_feat.astype(jnp.bfloat16)

    if Fp != F or OUTP != out_dim:
        fcw_p = jnp.zeros((Fp, OUTP), jnp.bfloat16).at[:F, :out_dim].set(
            fc_w.astype(jnp.bfloat16))
    else:
        fcw_p = fc_w.astype(jnp.bfloat16)
    if OUTP != out_dim:
        fcb_p = jnp.full((1, OUTP), _MASK_VALUE,
                         jnp.float32).at[:, :out_dim].set(fc_b)
    else:
        fcb_p = fc_b.astype(jnp.float32)

    # VMEM budget derived from the actual tile footprint (double-buffered
    # inputs/outputs + persistent scratch), capped at v7x's 64 MiB per TC.
    vmem_bytes = (
        2 * (Bd * 4                    # dst projection column
             + Bs * Fp * 2             # src tile (bf16)
             + Bs * 4                  # src projection row
             + Fp * OUTP * 2           # fc weight (bf16)
             + OUTP * 4)               # fc bias
        + 2 * Bd * OUTP * 4            # output tile
        + Bd * Fp * 4 + 2 * Bd * 4)    # acc / m / l scratch
    vmem_limit = int(min(max(2 * vmem_bytes, 32 * 1024 * 1024),
                         64 * 1024 * 1024))

    kernel = functools.partial(_gat_dir_kernel, use_ones_col=use_ones_col,
                               denom_col=denom_col)

    cost = pl.CostEstimate(
        flops=int(2.0 * Nd_p * Ns_p * Fp + 2.0 * Nd_p * Fp * OUTP
                  + 8.0 * Nd_p * Ns_p),
        transcendentals=int(Nd_p * Ns_p + Nd_p * OUTP),
        bytes_accessed=int(4 * Nd_p
                           + n_dst_blocks * (2 * Ns_p * Fp + 4 * Ns_p)
                           + 2 * Fp * OUTP + 4 * Nd_p * OUTP),
    )

    out = pl.pallas_call(
        kernel,
        out_shape=jax.ShapeDtypeStruct((Nd_p, OUTP), jnp.float32),
        grid_spec=pltpu.PrefetchScalarGridSpec(
            num_scalar_prefetch=0,
            grid=(n_dst_blocks, n_src_blocks),
            in_specs=[
                pl.BlockSpec((Bd, 1), lambda i, j: (i, 0)),      # dst proj+bias
                pl.BlockSpec((Bs, Fp), lambda i, j: (j, 0)),     # src feats bf16
                pl.BlockSpec((1, Bs), lambda i, j: (0, j)),      # src projection
                pl.BlockSpec((Fp, OUTP), lambda i, j: (0, 0)),   # fc weight bf16
                pl.BlockSpec((1, OUTP), lambda i, j: (0, 0)),    # fc bias padded
            ],
            out_specs=pl.BlockSpec((Bd, OUTP), lambda i, j: (i, 0)),
            scratch_shapes=[
                pltpu.VMEM((Bd, 1), jnp.float32),    # running max
                pltpu.VMEM((Bd, 1), jnp.float32),    # running sum (fallback)
                pltpu.VMEM((Bd, Fp), jnp.float32),   # running weighted sum
            ]),
        compiler_params=pltpu.CompilerParams(
            dimension_semantics=("parallel", "arbitrary"),
            vmem_limit_bytes=vmem_limit),
        cost_estimate=cost,
    )(s_dst, src_p, s_src, fcw_p, fcb_p)

    return out[:Nd, :out_dim]


def gat_layer_forward(doc_hidden, word_hidden, params,
                      *, block_dst=512, block_src=512):
    """GATLayer.forward (eval mode) with the heavy math inside Pallas kernels."""
    # etype 'include'  : doc (src) -> word (dst), weights attn_fc_d2w
    word_out = _gat_direction(
        word_hidden, doc_hidden,
        params["a1_dst"], params["a1_src"], params["a1_b"],
        params["fc_w"], params["fc_b"],
        block_dst=block_dst, block_src=block_src)
    # etype 'included' : word (src) -> doc (dst), weights attn_fc_w2d
    doc_out = _gat_direction(
        doc_hidden, word_hidden,
        params["a2_dst"], params["a2_src"], params["a2_b"],
        params["fc_w"], params["fc_b"],
        block_dst=block_dst, block_src=block_src)
    return doc_out, word_out


# ----------------------------------------------------------------------------
# Pure-JAX reference mirroring the PyTorch forward (eval mode).
# ----------------------------------------------------------------------------
def _leaky_relu(x):
    return jnp.where(x > 0, x, NEG_SLOPE * x)


def _softmax(x, axis):
    m = jnp.max(x, axis=axis, keepdims=True)
    p = jnp.exp(x - m)
    return p / jnp.sum(p, axis=axis, keepdims=True)


def gat_layer_reference(doc_hidden, word_hidden, params):
    doc, word = doc_hidden, word_hidden
    e1 = _leaky_relu(doc @ params["a1_src"] + (word @ params["a1_dst"]).T
                     + params["a1_b"][0, 0])
    h_word = _softmax(e1, axis=0).T @ doc
    e2 = _leaky_relu(word @ params["a2_src"] + (doc @ params["a2_dst"]).T
                     + params["a2_b"][0, 0])
    h_doc = _softmax(e2, axis=0).T @ word
    out_doc = _softmax(h_doc @ params["fc_w"] + params["fc_b"], axis=1)
    out_word = _softmax(h_word @ params["fc_w"] + params["fc_b"], axis=1)
    return out_doc, out_word


def init_params(key, in_dim, out_dim):
    """Deterministic init mimicking nn.Linear (uniform +-1/sqrt(fan_in))."""
    k = jax.random.split(key, 6)
    lim_a = 1.0 / jnp.sqrt(2.0 * in_dim)
    lim_f = 1.0 / jnp.sqrt(1.0 * in_dim)
    # attn_fc_* : Linear(2*in_dim, 1) -> split weight into src / dst halves
    a1 = jax.random.uniform(k[0], (2 * in_dim, 1), jnp.float32, -lim_a, lim_a)
    a2 = jax.random.uniform(k[1], (2 * in_dim, 1), jnp.float32, -lim_a, lim_a)
    return {
        "a1_src": a1[:in_dim], "a1_dst": a1[in_dim:],
        "a1_b": jax.random.uniform(k[2], (1, 1), jnp.float32, -lim_a, lim_a),
        "a2_src": a2[:in_dim], "a2_dst": a2[in_dim:],
        "a2_b": jax.random.uniform(k[3], (1, 1), jnp.float32, -lim_a, lim_a),
        # fc : Linear(in_dim, out_dim), stored transposed (in_dim, out_dim)
        "fc_w": jax.random.uniform(k[4], (in_dim, out_dim), jnp.float32,
                                   -lim_f, lim_f),
        "fc_b": jax.random.uniform(k[5], (1, out_dim), jnp.float32,
                                   -lim_f, lim_f),
    }


if __name__ == "__main__":
    key = jax.random.PRNGKey(0)
    k_doc, k_word, k_params, k_doc2, k_word2 = jax.random.split(key, 5)

    # Small shapes implied by the module.
    num_doc, num_word, in_dim, out_dim = 4, 8, 32, 16
    doc_hidden = jax.random.normal(k_doc, (num_doc, in_dim), jnp.float32)
    word_hidden = jax.random.normal(k_word, (num_word, in_dim), jnp.float32)
    params = init_params(k_params, in_dim, out_dim)

    out_doc, out_word = gat_layer_forward(doc_hidden, word_hidden, params)
    out_doc = jax.block_until_ready(out_doc)
    out_word = jax.block_until_ready(out_word)

    ref_doc, ref_word = gat_layer_reference(doc_hidden, word_hidden, params)
    assert out_doc.shape == (num_doc, out_dim)
    assert out_word.shape == (num_word, out_dim)
    # bf16 MXU operands -> relaxed tolerance vs f32 reference.
    assert jnp.allclose(out_doc, ref_doc, atol=1e-2, rtol=1e-2)
    assert jnp.allclose(out_word, ref_word, atol=1e-2, rtol=1e-2)

    # Second check: multi-block online softmax + padded-src (-1e30) columns.
    nd2, nw2 = 40, 200
    doc2 = jax.random.normal(k_doc2, (nd2, in_dim), jnp.float32)
    word2 = jax.random.normal(k_word2, (nw2, in_dim), jnp.float32)
    o_d2, o_w2 = gat_layer_forward(doc2, word2, params,
                                   block_dst=16, block_src=64)
    o_d2 = jax.block_until_ready(o_d2)
    o_w2 = jax.block_until_ready(o_w2)
    r_d2, r_w2 = gat_layer_reference(doc2, word2, params)
    assert jnp.allclose(o_d2, r_d2, atol=1e-2, rtol=1e-2)
    assert jnp.allclose(o_w2, r_w2, atol=1e-2, rtol=1e-2)

    # Third check: in_dim == 128 (F == Fp) exercises the explicit-l_sc
    # fallback (no ones-column) and the >=2-dst-block split path.
    in_dim3, out_dim3 = 128, 10
    params3 = init_params(jax.random.PRNGKey(7), in_dim3, out_dim3)
    doc3 = jax.random.normal(jax.random.PRNGKey(8), (8, in_dim3), jnp.float32)
    word3 = jax.random.normal(jax.random.PRNGKey(9), (24, in_dim3), jnp.float32)
    o_d3, o_w3 = gat_layer_forward(doc3, word3, params3)
    o_d3 = jax.block_until_ready(o_d3)
    o_w3 = jax.block_until_ready(o_w3)
    r_d3, r_w3 = gat_layer_reference(doc3, word3, params3)
    assert jnp.allclose(o_d3, r_d3, atol=1e-2, rtol=1e-2)
    assert jnp.allclose(o_w3, r_w3, atol=1e-2, rtol=1e-2)

    print("KERNEL_OK")
</pallas_src>

<mosaic_0001>
module attributes {stable_mosaic.version = 11 : i64} {
  func.func @_gat_dir_kernel(%arg0: i32, %arg1: i32, %arg2: memref<8x1xf32, #tpu.memory_space<vmem>>, %arg3: memref<8x128xbf16, #tpu.memory_space<vmem>>, %arg4: memref<1x8xf32, #tpu.memory_space<vmem>>, %arg5: memref<128x128xbf16, #tpu.memory_space<vmem>>, %arg6: memref<1x128xf32, #tpu.memory_space<vmem>>, %arg7: memref<8x128xf32, #tpu.memory_space<vmem>>, %arg8: memref<8x1xf32, #tpu.memory_space<vmem>>, %arg9: memref<8x1xf32, #tpu.memory_space<vmem>>, %arg10: memref<8x128xf32, #tpu.memory_space<vmem>>) attributes {dimension_semantics = [#tpu.dimension_semantics<parallel>, #tpu.dimension_semantics<arbitrary>], iteration_bounds = array<i64: 1, 1>, scalar_prefetch = 0 : i64, scratch_operands = 3 : i64, tpu.core_type = #tpu.core_type<tc>, window_params = [{transform_indices = @transform_0, window_bounds = array<i64: 8, 1>}, {transform_indices = @transform_1, window_bounds = array<i64: 8, 128>}, {transform_indices = @transform_2, window_bounds = array<i64: 1, 8>}, {pipeline_mode = #tpu.pipeline_mode<synchronous>, transform_indices = @transform_3, window_bounds = array<i64: 128, 128>}, {pipeline_mode = #tpu.pipeline_mode<synchronous>, transform_indices = @transform_4, window_bounds = array<i64: 1, 128>}, {transform_indices = @transform_5, window_bounds = array<i64: 8, 128>}]} {
    %c0_i32 = arith.constant 0 : i32
    %0 = arith.cmpi eq, %arg1, %c0_i32 : i32
    %1 = arith.extui %0 : i1 to i32
    %c0_i32_0 = arith.constant 0 : i32
    %2 = arith.cmpi ne, %1, %c0_i32_0 : i32
    scf.if %2 {
      %cst_19 = arith.constant 0xFF800000 : f32
      %34 = vector.broadcast %cst_19 : f32 to vector<8x1xf32>
      %c0_20 = arith.constant 0 : index
      %c0_21 = arith.constant 0 : index
      %35 = vector.load %arg8[%c0_20, %c0_21] : memref<8x1xf32, #tpu.memory_space<vmem>>, vector<8x1xf32>
      tpu.vector_store %arg8[%c0_20, %c0_21], %34 {strides = array<i32>} : memref<8x1xf32, #tpu.memory_space<vmem>>, vector<8x1xf32>,
      %cst_22 = arith.constant 0.000000e+00 : f32
      %36 = vector.broadcast %cst_22 : f32 to vector<8x1xf32>
      %c0_23 = arith.constant 0 : index
      %c0_24 = arith.constant 0 : index
      %37 = vector.load %arg9[%c0_23, %c0_24] : memref<8x1xf32, #tpu.memory_space<vmem>>, vector<8x1xf32>
      tpu.vector_store %arg9[%c0_23, %c0_24], %36 {strides = array<i32>} : memref<8x1xf32, #tpu.memory_space<vmem>>, vector<8x1xf32>,
      %cst_25 = arith.constant 0.000000e+00 : f32
      %38 = vector.broadcast %cst_25 : f32 to vector<8x128xf32>
      %c0_26 = arith.constant 0 : index
      %c0_27 = arith.constant 0 : index
      %39 = vector.load %arg10[%c0_26, %c0_27] : memref<8x128xf32, #tpu.memory_space<vmem>>, vector<8x128xf32>
      tpu.vector_store %arg10[%c0_26, %c0_27], %38 {strides = array<i32>} : memref<8x128xf32, #tpu.memory_space<vmem>>, vector<8x128xf32>,
    } else {
    }
    %c0 = arith.constant 0 : index
    %c0_1 = arith.constant 0 : index
    %3 = vector.load %arg2[%c0, %c0_1] : memref<8x1xf32, #tpu.memory_space<vmem>>, vector<8x1xf32>
    %c0_2 = arith.constant 0 : index
    %c0_3 = arith.constant 0 : index
    %4 = vector.load %arg4[%c0_2, %c0_3] : memref<1x8xf32, #tpu.memory_space<vmem>>, vector<1x8xf32>
    %5 = vector.broadcast %3 : vector<8x1xf32> to vector<8x8xf32>
    %6 = vector.broadcast %4 : vector<1x8xf32> to vector<8x8xf32>
    %7 = arith.addf %5, %6 : vector<8x8xf32>
    %cst = arith.constant 0.000000e+00 : f32
    %8 = vector.broadcast %cst : f32 to vector<8x8xf32>
    %9 = arith.cmpf ogt, %7, %8 : vector<8x8xf32>
    %cst_4 = arith.constant 0.00999999977 : f32
    %10 = vector.broadcast %cst_4 : f32 to vector<8x8xf32>
    %11 = arith.mulf %10, %7 : vector<8x8xf32>
    %12 = arith.select %9, %7, %11 : vector<8x8xi1>, vector<8x8xf32>
    %c0_5 = arith.constant 0 : index
    %c0_6 = arith.constant 0 : index
    %13 = vector.load %arg8[%c0_5, %c0_6] : memref<8x1xf32, #tpu.memory_space<vmem>>, vector<8x1xf32>
    %cst_7 = arith.constant dense<0xFF800000> : vector<8xf32>
    %14 = vector.multi_reduction <maximumf>, %12, %cst_7 [1] : vector<8x8xf32> to vector<8xf32>
    %15 = vector.shape_cast %14 : vector<8xf32> to vector<8x1xf32>
    %16 = arith.maximumf %13, %15 : vector<8x1xf32>
    %17 = arith.subf %13, %16 : vector<8x1xf32>
    %18 = math.exp %17 : vector<8x1xf32>
    %19 = vector.broadcast %16 : vector<8x1xf32> to vector<8x8xf32>
    %20 = arith.subf %12, %19 : vector<8x8xf32>
    %21 = math.exp %20 : vector<8x8xf32>
    %c0_8 = arith.constant 0 : index
    %c0_9 = arith.constant 0 : index
    %22 = vector.load %arg10[%c0_8, %c0_9] : memref<8x128xf32, #tpu.memory_space<vmem>>, vector<8x128xf32>
    %23 = vector.broadcast %18 : vector<8x1xf32> to vector<8x128xf32>
    %24 = arith.mulf %23, %22 : vector<8x128xf32>
    %25 = arith.truncf %21 : vector<8x8xf32> to vector<8x8xbf16>
    %c0_10 = arith.constant 0 : index
    %c0_11 = arith.constant 0 : index
    %26 = vector.load %arg3[%c0_10, %c0_11] : memref<8x128xbf16, #tpu.memory_space<vmem>>, vector<8x128xbf16>
    %cst_12 = arith.constant dense<0.000000e+00> : vector<8x128xf32>
    %27 = tpu.matmul %25, %26, %cst_12 {dimension_numbers = #tpu.dot_dimension_numbers<[1], [0], [0], [1], [0, 0, 1, 1], [], []>} : vector<8x8xbf16>, vector<8x128xbf16>, vector<8x128xf32> -> vector<8x128xf32>
    %28 = arith.addf %24, %27 : vector<8x128xf32>
    %c0_13 = arith.constant 0 : index
    %c0_14 = arith.constant 0 : index
    %29 = vector.load %arg10[%c0_13, %c0_14] : memref<8x128xf32, #tpu.memory_space<vmem>>, vector<8x128xf32>
    tpu.vector_store %arg10[%c0_13, %c0_14], %28 {strides = array<i32>} : memref<8x128xf32, #tpu.memory_space<vmem>>, vector<8x128xf32>,
    %c0_15 = arith.constant 0 : index
    %c0_16 = arith.constant 0 : index
    %30 = vector.load %arg8[%c0_15, %c0_16] : memref<8x1xf32, #tpu.memory_space<vmem>>, vector<8x1xf32>
    tpu.vector_store %arg8[%c0_15, %c0_16], %16 {strides = array<i32>} : memref<8x1xf32, #tpu.memory_space<vmem>>, vector<8x1xf32>,
    %c0_i32_17 = arith.constant 0 : i32
    %31 = arith.cmpi eq, %arg1, %c0_i32_17 : i32
    %32 = arith.extui %31 : i1 to i32
    %c0_i32_18 = arith.constant 0 : i32
    %33 = arith.cmpi ne, %32, %c0_i32_18 : i32
    scf.if %33 {
      %c0_19 = arith.constant 0 : index
      %c0_20 = arith.constant 0 : index
      %34 = vector.load %arg10[%c0_19, %c0_20] : memref<8x128xf32, #tpu.memory_space<vmem>>, vector<8x128xf32>
      %35 = vector.extract_strided_slice %34 {offsets = [0, 32], sizes = [8, 1], strides = [1, 1]} : vector<8x128xf32> to vector<8x1xf32>
      %36 = vector.broadcast %35 : vector<8x1xf32> to vector<8x128xf32>
      %37 = arith.divf %34, %36 : vector<8x128xf32>
      %38 = arith.truncf %37 : vector<8x128xf32> to vector<8x128xbf16>
      %c0_21 = arith.constant 0 : index
      %c0_22 = arith.constant 0 : index
      %39 = vector.load %arg5[%c0_21, %c0_22] : memref<128x128xbf16, #tpu.memory_space<vmem>>, vector<128x128xbf16>
      %cst_23 = arith.constant dense<0.000000e+00> : vector<8x128xf32>
      %40 = tpu.matmul %38, %39, %cst_23 {dimension_numbers = #tpu.dot_dimension_numbers<[1], [0], [0], [1], [0, 0, 1, 1], [], []>} : vector<8x128xbf16>, vector<128x128xbf16>, vector<8x128xf32> -> vector<8x128xf32>
      %c0_24 = arith.constant 0 : index
      %c0_25 = arith.constant 0 : index
      %41 = vector.load %arg6[%c0_24, %c0_25] : memref<1x128xf32, #tpu.memory_space<vmem>>, vector<1x128xf32>
      %42 = vector.broadcast %41 : vector<1x128xf32> to vector<8x128xf32>
      %43 = arith.addf %40, %42 : vector<8x128xf32>
      %cst_26 = arith.constant dense<0xFF800000> : vector<8xf32>
      %44 = vector.multi_reduction <maximumf>, %43, %cst_26 [1] : vector<8x128xf32> to vector<8xf32>
      %45 = vector.shape_cast %44 : vector<8xf32> to vector<8x1xf32>
      %46 = vector.broadcast %45 : vector<8x1xf32> to vector<8x128xf32>
      %47 = arith.subf %43, %46 : vector<8x128xf32>
      %48 = math.exp %47 : vector<8x128xf32>
      %cst_27 = arith.constant dense<0.000000e+00> : vector<8xf32>
      %49 = vector.multi_reduction <add>, %48, %cst_27 [1] : vector<8x128xf32> to vector<8xf32>
      %50 = vector.shape_cast %49 : vector<8xf32> to vector<8x1xf32>
      %51 = vector.broadcast %50 : vector<8x1xf32> to vector<8x128xf32>
      %52 = arith.divf %48, %51 : vector<8x128xf32>
      %c0_28 = arith.constant 0 : index
      %c0_29 = arith.constant 0 : index
      %53 = vector.load %arg7[%c0_28, %c0_29] : memref<8x128xf32, #tpu.memory_space<vmem>>, vector<8x128xf32>
      tpu.vector_store %arg7[%c0_28, %c0_29], %52 {strides = array<i32>} : memref<8x128xf32, #tpu.memory_space<vmem>>, vector<8x128xf32>,
    } else {
    }
    return
  }
  func.func @transform_0(%arg0: i32, %arg1: i32) -> (i32, i32) {
    %c0_i32 = arith.constant 0 : i32
    %c0_i32_0 = arith.constant 0 : i32
    return %arg0, %c0_i32 : i32, i32
  }
  func.func @transform_1(%arg0: i32, %arg1: i32) -> (i32, i32) {
    %c0_i32 = arith.constant 0 : i32
    %c0_i32_0 = arith.constant 0 : i32
    return %arg1, %c0_i32 : i32, i32
  }
  func.func @transform_2(%arg0: i32, %arg1: i32) -> (i32, i32) {
    %c0_i32 = arith.constant 0 : i32
    %c0_i32_0 = arith.constant 0 : i32
    return %c0_i32, %arg1 : i32, i32
  }
  func.func @transform_3(%arg0: i32, %arg1: i32) -> (i32, i32) {
    %c0_i32 = arith.constant 0 : i32
    %c0_i32_0 = arith.constant 0 : i32
    %c0_i32_1 = arith.constant 0 : i32
    return %c0_i32, %c0_i32_0 : i32, i32
  }
  func.func @transform_4(%arg0: i32, %arg1: i32) -> (i32, i32) {
    %c0_i32 = arith.constant 0 : i32
    %c0_i32_0 = arith.constant 0 : i32
    %c0_i32_1 = arith.constant 0 : i32
    return %c0_i32, %c0_i32_0 : i32, i32
  }
  func.func @transform_5(%arg0: i32, %arg1: i32) -> (i32, i32) {
    %c0_i32 = arith.constant 0 : i32
    %c0_i32_0 = arith.constant 0 : i32
    return %arg0, %c0_i32 : i32, i32
  }
}

</mosaic_0001>

<llo_original>
// kernel: tpu_custom_call.1
$region0: #{tpu_custom_call.1}
  #allocation0 [shape = 'u32[]', space=smem, size = 0x4, offset = 0x4, fixed_abs, tag = 'smem constant byte address 0x4 - core index']
  #allocation1 [shape = 'u32[144,128]{1,0:T(1,128)}', space=vmem, size = 0x12000, scoped, tag = 'internal scratch']
  #allocation2 [shape = 'f32[8,1]{1,0:T(8,128)}', space=vmem, size = 0x1000, scoped, tag = 'scratch operand']
  #allocation3 [shape = 'f32[8,1]{1,0:T(8,128)}', space=vmem, size = 0x1000, scoped, tag = 'scratch operand']
  #allocation4 [shape = 'f32[8,128]{1,0:T(8,128)}', space=vmem, size = 0x1000, scoped, tag = 'scratch operand']
  %s0 = inlined_call_operand.vmem [shape: f32[8,1], index: 0, kind: input, shape index: {}]
  %s1 = inlined_call_operand.vmem [shape: bf16[8,128], index: 1, kind: input, shape index: {}]
  %s2 = inlined_call_operand.vmem [shape: f32[1,8], index: 2, kind: input, shape index: {}]
  %s3 = inlined_call_operand.hbm [shape: bf16[128,128], index: 3, kind: input, shape index: {}]
  %s4 = inlined_call_operand.vmem [shape: f32[1,128], index: 4, kind: input, shape index: {}]
  %s5 = inlined_call_operand.hbm [shape: f32[8,128], index: 5, kind: output, shape index: {}]
  %s6 = sld [smem:[#allocation0]]
  $region42: #{tpu_custom_call.1} parent=0
    _
  %s8 = ssub.s32 1, %s6
  %s9 = scalar_select 0, %s8, %s6
  $region1: #{tpu_custom_call.1} parent=0
    #allocation5 [shape = 'u8[32768]{0}', space=vmem, size = 0x8000, scoped, tag = 'input window, operand 3, single buffered']
    #allocation6 [shape = 's32[1]{0}', space=sflag, size = 0x4, scoped, tag = 'scoped memory for tpu_custom_call.1']
    #allocation7 [shape = 's32[1]{0}', space=sflag, size = 0x4, scoped, tag = 'scoped memory for tpu_custom_call.1']
    #allocation8 [shape = 'u8[4096]{0}', space=vmem, size = 0x1000, scoped, tag = 'output window, operand 0, single buffered']
    %10 = vsyncpa [#allocation6], 0
    %11 = vsyncpa [#allocation7], 0
    // Predicated region
    $region2: #{tpu_custom_call.1} parent=1 // pred_check
      _
    $region3: #{tpu_custom_call.1} parent=1 // pred_check_branch
      %13 = sbr.rel (0) target = $region5
    $region4: #{tpu_custom_call.1} parent=1 // pred_region
      _
    $region5: #{tpu_custom_call.1} parent=1 // pred_fallthru
      _
    // Predicated region
    $region6: #{tpu_custom_call.1} parent=1 // pred_check
      _
    $region7: #{tpu_custom_call.1} parent=1 // pred_check_branch
      %15 = sbr.rel (0) target = $region9
    $region8: #{tpu_custom_call.1} parent=1 // pred_region
      _
    $region9: #{tpu_custom_call.1} parent=1 // pred_fallthru
      _
    // Predicated region
    $region10: #{tpu_custom_call.1} parent=1 // pred_check
      _
    $region11: #{tpu_custom_call.1} parent=1 // pred_check_branch
      %17 = sbr.rel (0) target = $region13
    $region12: #{tpu_custom_call.1} parent=1 // pred_region
      _
    $region13: #{tpu_custom_call.1} parent=1 // pred_fallthru
      _
    // Predicated region
    $region14: #{tpu_custom_call.1} parent=1 // pred_check
      _
    $region15: #{tpu_custom_call.1} parent=1 // pred_check_branch
      %19 = sbr.rel (0) target = $region17
    $region16: #{tpu_custom_call.1} parent=1 // pred_region
      %s21 = ssub.s32 1024, 1024
      %22 = vsyncadd [#allocation6], %s21
      %s23 = sshll.u32 [#allocation5], 4
      %s24 = int_to_ptr.vmem [resolvable:$true] %s23
      %29 = dma.hbm_to_vmem [thread:$0]  %s3, 1024, %s24, [#allocation6], 64, 64, 4
    $region17: #{tpu_custom_call.1} parent=1 // pred_fallthru
      _
    // Predicated region
    $region18: #{tpu_custom_call.1} parent=1 // pred_check
      _
    $region19: #{tpu_custom_call.1} parent=1 // pred_check_branch
      %31 = sbr.rel (0) target = $region21
    $region20: #{tpu_custom_call.1} parent=1 // pred_region
      _
    $region21: #{tpu_custom_call.1} parent=1 // pred_fallthru
      _
    // Predicated region
    $region22: #{tpu_custom_call.1} parent=1 // pred_check
      _
    $region23: #{tpu_custom_call.1} parent=1 // pred_check_branch
      %33 = sbr.rel (0) target = $region25
    $region24: #{tpu_custom_call.1} parent=1 // pred_region
      %34 = dma.done [#allocation6], 1024
    $region25: #{tpu_custom_call.1} parent=1 // pred_fallthru
      _
    %p36 = scmp.eq.s32.totalorder 0, 0
    // Predicated region
    $region26: #{tpu_custom_call.1} parent=1 // pred_check
      %p37 = pneg %p36
    $region27: #{tpu_custom_call.1} parent=1 // pred_check_branch
      %39 = sbr.rel (%p37) target = $region29
    $region28: #{tpu_custom_call.1} parent=1 // pred_region
      %vm40 = vcmask 7168
      %41 = vst.msk [vmem:[#allocation2] sm:$0xff] %vm40, -inf
      %42 = vst.msk [vmem:[#allocation3] sm:$0xff] %vm40, 0.0
      %43 = vst [vmem:[#allocation4] sm:$0xff] 0.0
    $region29: #{tpu_custom_call.1} parent=1 // pred_fallthru
      _
    %v44 = vld [vmem:[%s0] sm:$0xff]
    %v45 = vld [vmem:[%s2] sm:$0x1]
    %47 = vset.pattern.permute.xlu0 0
    %48 = vperm.xlu0 %47, %v44
    %v49 = vpop.permute.xlu0 %48
    %v52 = vlaneseq
    %v53 = vshrl.u32 %v52, 7
    %v54 = vsub.s32 0, %v53
    %v55 = vrot.slane %v45, %v54
    %v57 = vadd.f32 %v49, %v55
    %vm58 = vcmp.gt.f32.partialorder %v57, 0.0
    %v59 = vmul.f32 %v57, 0.01
    %v60 = vsel %vm58, %v57, %v59
    %v61 = vld [vmem:[#allocation2] sm:$0xff]
    %vm62 = vcmask 64512
    %v63 = vsel %vm62, %v60, -inf
    %64 = vmax.xlane.f32.xlu0 %v63
    %v65 = vpop.xlane.xlu0 %64
    %v66 = vmax.f32 %v61, %v65
    %v67 = vsub.f32 %v61, %v66
    %v68 = vmul.f32 %v67, 1.442695
    %v69 = vpow.pop %v68
    %71 = vset.pattern.permute.xlu0 0
    %72 = vperm.xlu0 %71, %v66
    %v73 = vpop.permute.xlu0 %72
    %v75 = vsub.f32 %v60, %v73
    %v76 = vmul.f32 %v75, 1.442695
    %v77 = vpow.pop %v76
    %v78 = vld [vmem:[#allocation4] sm:$0xff]
    %80 = vset.pattern.permute.xlu0 0
    %81 = vperm.xlu0 %80, %v69
    %v82 = vpop.permute.xlu0 %81
    %v84 = vmul.f32 %v82, %v78
    %v85 = vpack.c.bf16 %v77, %v77
    %v86 = vld [vmem:[%s1] sm:$0xf]
    %v88 = vsel %vm62, %v85, 0
    %vm90 = vcmask 1043456
    %v92 = vsel %vm90, %v86, 0
    %94 = vmatprep.subr.bf16.mxu0 0
    %95 = vmatpush1.bf16.msra.mxu0 0
    %96 = vmatprep.subr.bf16.mxu0 0
    %97 = vmatpush1.bf16.msra.mxu0 0
    %98 = vmatprep.subr.bf16.mxu0 0
    %99 = vmatpush1.bf16.msra.mxu0 0
    %100 = vmatprep.subr.bf16.mxu0 0
    %101 = vmatpush1.bf16.msra.mxu0 0
    %102 = vmatprep.subr.bf16.mxu0 0
    %103 = vmatpush1.bf16.msra.mxu0 0
    %104 = vmatprep.subr.bf16.mxu0 0
    %105 = vmatpush1.bf16.msra.mxu0 0
    %106 = vmatprep.subr.bf16.mxu0 0
    %107 = vmatpush1.bf16.msra.mxu0 0
    %108 = vmatprep.subr.bf16.mxu0 0
    %109 = vmatpush1.bf16.msra.mxu0 %v92
    %110 = vmatprep.subr.bf16.mxu0 0
    %111 = vmatpush2.bf16.msra.mxu0 0
    %112 = vmatprep.subr.bf16.mxu0 0
    %113 = vmatpush2.bf16.msra.mxu0 0
    %114 = vmatprep.subr.bf16.mxu0 0
    %115 = vmatpush2.bf16.msra.mxu0 0
    %116 = vmatprep.subr.bf16.mxu0 0
    %117 = vmatpush2.bf16.msra.mxu0 0
    %118 = vmatprep.subr.bf16.mxu0 0
    %119 = vmatpush2.bf16.msra.mxu0 0
    %120 = vmatprep.subr.bf16.mxu0 0
    %121 = vmatpush2.bf16.msra.mxu0 0
    %122 = vmatprep.subr.bf16.mxu0 0
    %123 = vmatpush2.bf16.msra.mxu0 0
    %124 = vmatprep.subr.bf16.mxu0 0
    %125 = vmatpush2.bf16.msra.mxu0 0
    %126 = vmatprep.mubr.bf16.mxu0 0
    %127 = vmatmul.mubr.bf16.gmra.mxu0 %v88
    %v128 = vpop.f32.mrf.mxu0
    %v129 = vadd.f32 0.0, %v128
    %v130 = vpop.f32.mrf.mxu0
    %v131 = vpop.f32.mrf.mxu0
    %v132 = vpop.f32.mrf.mxu0
    %133 = vdwg.mxu0
    %v134 = vadd.f32 %v84, %v129
    %135 = vst [vmem:[#allocation4] sm:$0xff] %v134
    %vm136 = vcmask 7168
    %137 = vst.msk [vmem:[#allocation2] sm:$0xff] %vm136, %v66
    // Predicated region
    $region30: #{tpu_custom_call.1} parent=1 // pred_check
      %p138 = pneg %p36
    $region31: #{tpu_custom_call.1} parent=1 // pred_check_branch
      %140 = sbr.rel (%p138) target = $region33
    $region32: #{tpu_custom_call.1} parent=1 // pred_region
      %v141 = vld [vmem:[#allocation4] sm:$0xff]
      %143 = vset.pattern.permute.xlu0 32
      %144 = vperm.xlu0 %143, %v141
      %v145 = vpop.permute.xlu0 %144
      %v147 = vrcp.pop %v145
      %v148 = vmul.f32 %v141, %v147
      %v149 = vpack.c.bf16 %v148, %v148
      %v150 = vld [vmem:[#allocation5] sm:$0xf]
      %v151 = vld [vmem:[#allocation5 + $0x4] sm:$0xf]
      %v152 = vld [vmem:[#allocation5 + $0x8] sm:$0xf]
      %v153 = vld [vmem:[#allocation5 + $0xc] sm:$0xf]
      %v154 = vld [vmem:[#allocation5 + $0x10] sm:$0xf]
      %v155 = vld [vmem:[#allocation5 + $0x14] sm:$0xf]
      %v156 = vld [vmem:[#allocation5 + $0x18] sm:$0xf]
      %v157 = vld [vmem:[#allocation5 + $0x1c] sm:$0xf]
      %v158 = vld [vmem:[#allocation5 + $0x20] sm:$0xf]
      %v159 = vld [vmem:[#allocation5 + $0x24] sm:$0xf]
      %v160 = vld [vmem:[#allocation5 + $0x28] sm:$0xf]
      %v161 = vld [vmem:[#allocation5 + $0x2c] sm:$0xf]
      %v162 = vld [vmem:[#allocation5 + $0x30] sm:$0xf]
      %v163 = vld [vmem:[#allocation5 + $0x34] sm:$0xf]
      %v164 = vld [vmem:[#allocation5 + $0x38] sm:$0xf]
      %v165 = vld [vmem:[#allocation5 + $0x3c] sm:$0xf]
      %v166 = vld [vmem:[%s4] sm:$0x1]
      %v168 = vlaneseq
      %v169 = vshrl.u32 %v168, 7
      %v170 = vsub.s32 0, %v169
      %v171 = vrot.slane %v166, %v170
      %v189 = vunpack.c.l.b16 %v150
      %v190 = vunpack.c.l.b16 %v151
      %v191 = vunpack.c.l.b16 %v152
      %v192 = vunpack.c.l.b16 %v153
      %v193 = vunpack.c.l.b16 %v154
      %v194 = vunpack.c.l.b16 %v155
      %v195 = vunpack.c.l.b16 %v156
      %v196 = vunpack.c.l.b16 %v157
      %v197 = vunpack.c.l.b16 %v158
      %v198 = vunpack.c.l.b16 %v159
      %v199 = vunpack.c.l.b16 %v160
      %v200 = vunpack.c.l.b16 %v161
      %v201 = vunpack.c.l.b16 %v162
      %v202 = vunpack.c.l.b16 %v163
      %v203 = vunpack.c.l.b16 %v164
      %v204 = vunpack.c.l.b16 %v165
      %v205 = vpack.c.b16 %v190, %v189
      %v206 = vpack.c.b16 %v192, %v191
      %v207 = vpack.c.b16 %v194, %v193
      %v208 = vpack.c.b16 %v196, %v195
      %v209 = vpack.c.b16 %v198, %v197
      %v210 = vpack.c.b16 %v200, %v199
      %v211 = vpack.c.b16 %v202, %v201
      %v212 = vpack.c.b16 %v204, %v203
      %221 = vmatprep.subr.bf16.mxu0 0
      %222 = vmatpush1.bf16.msra.mxu0 %v212
      %223 = vmatprep.subr.bf16.mxu0 0
      %224 = vmatpush1.bf16.msra.mxu0 %v211
      %225 = vmatprep.subr.bf16.mxu0 0
      %226 = vmatpush1.bf16.msra.mxu0 %v210
      %227 = vmatprep.subr.bf16.mxu0 0
      %228 = vmatpush1.bf16.msra.mxu0 %v209
      %229 = vmatprep.subr.bf16.mxu0 0
      %230 = vmatpush1.bf16.msra.mxu0 %v208
      %231 = vmatprep.subr.bf16.mxu0 0
      %232 = vmatpush1.bf16.msra.mxu0 %v207
      %233 = vmatprep.subr.bf16.mxu0 0
      %234 = vmatpush1.bf16.msra.mxu0 %v206
      %235 = vmatprep.subr.bf16.mxu0 0
      %236 = vmatpush1.bf16.msra.mxu0 %v205
      %237 = vmatprep.subr.bf16.mxu0 0
      %238 = vmatpush2.bf16.msra.mxu0 0
      %239 = vmatprep.subr.bf16.mxu0 0
      %240 = vmatpush2.bf16.msra.mxu0 0
      %241 = vmatprep.subr.bf16.mxu0 0
      %242 = vmatpush2.bf16.msra.mxu0 0
      %243 = vmatprep.subr.bf16.mxu0 0
      %244 = vmatpush2.bf16.msra.mxu0 0
      %245 = vmatprep.subr.bf16.mxu0 0
      %246 = vmatpush2.bf16.msra.mxu0 0
      %247 = vmatprep.subr.bf16.mxu0 0
      %248 = vmatpush2.bf16.msra.mxu0 0
      %249 = vmatprep.subr.bf16.mxu0 0
      %250 = vmatpush2.bf16.msra.mxu0 0
      %251 = vmatprep.subr.bf16.mxu0 0
      %252 = vmatpush2.bf16.msra.mxu0 0
      %253 = vmatprep.mubr.bf16.mxu0 0
      %254 = vmatmul.mubr.bf16.gmra.mxu0 %v149
      %v255 = vpop.f32.mrf.mxu0
      %v256 = vadd.f32 %v171, %v255
      %v257 = vpop.f32.mrf.mxu0
      %v258 = vpop.f32.mrf.mxu0
      %v259 = vpop.f32.mrf.mxu0
      %260 = vdwg.mxu0
      %261 = vmax.xlane.f32.xlu0 %v256
      %v262 = vpop.xlane.xlu0 %261
      %v263 = vsub.f32 %v256, %v262
      %v264 = vmul.f32 %v263, 1.442695
      %v265 = vpow.pop %v264
      %266 = vadd.xlane.f32.xlu0 %v265
      %v267 = vpop.xlane.xlu0 %266
      %v268 = vrcp.pop %v267
      %v269 = vmul.f32 %v265, %v268
      %270 = vst [vmem:[#allocation8] sm:$0xff] %v269
    $region33: #{tpu_custom_call.1} parent=1 // pred_fallthru
      _
    // Predicated region
    $region34: #{tpu_custom_call.1} parent=1 // pred_check
      _
    $region35: #{tpu_custom_call.1} parent=1 // pred_check_branch
      %272 = sbr.rel (0) target = $region37
    $region36: #{tpu_custom_call.1} parent=1 // pred_region
      %s274 = ssub.s32 128, 128
      %275 = vsyncadd [#allocation7], %s274
      %s277 = sshll.u32 [#allocation8], 4
      %s278 = int_to_ptr.vmem [resolvable:$true] %s277
      %280 = dma.vmem_to_hbm [thread:$0]  %s278, 128, %s5, [#allocation7]
    $region37: #{tpu_custom_call.1} parent=1 // pred_fallthru
      _
    // Predicated region
    $region38: #{tpu_custom_call.1} parent=1 // pred_check
      _
    $region39: #{tpu_custom_call.1} parent=1 // pred_check_branch
      %282 = sbr.rel (0) target = $region41
    $region40: #{tpu_custom_call.1} parent=1 // pred_region
      %283 = dma.done [#allocation7], 128
    $region41: #{tpu_custom_call.1} parent=1 // pred_fallthru
      _
    %284 = vsyncpa [#allocation6], 1
    %285 = vsyncpa [#allocation7], 1

</llo_original>
